<compile_context>
chip_gen: v7x
topology: tpu7x:2x2x1
jax: 0.10.0
libtpu: 0.0.40
codegen_flags: <defaults>
</compile_context>

<pallas_src>
import functools

import jax
import jax.numpy as jnp
from jax.experimental import pallas as pl
from jax.experimental.pallas import tpu as pltpu


MAX_TILE_B = 2048  # <5 MiB double-buffered footprint -> far under scoped VMEM everywhere


def _round_up(x: int, m: int) -> int:
    return ((x + m - 1) // m) * m


def policy_mlp_kernel(past_ref, fut_ref, w1p_ref, w1f_ref, b1_ref,
                      w2_ref, b2_ref, w3_ref, b3_ref, out_ref):
    """One batch tile of the MLP. Weights (bf16) stay VMEM-resident across grid steps.

    past: (TB, Dp) f32,  fut: (TB, Df) f32
    w1p:  (Dp, H) bf16,  w1f: (Df, H) bf16,  b1: (1, H) f32
    w2:   (H, H)  bf16,  b2:  (1, H) f32
    w3:   (H, Dout) bf16, b3: (1, Dout) f32
    out:  (TB, Dout) f32   (Dout == p * output_dim, narrow block == full array dim)
    """
    bf16 = jnp.bfloat16

    # input_layer: torch concat fused as a split-K pair of MXU dots; in-kernel bf16 cast
    # of the f32 activations is free VPU filler under the DMA-bound regime.
    h = (jnp.dot(past_ref[...].astype(bf16), w1p_ref[...],
                 preferred_element_type=jnp.float32)
         + jnp.dot(fut_ref[...].astype(bf16), w1f_ref[...],
                   preferred_element_type=jnp.float32)
         + b1_ref[...])
    h = jnp.where(h >= 0, h, 0.01 * h)          # leaky_relu(negative_slope=0.01)
    # dropout -> identity (eval)

    # single residual hidden block (n_layers - 2 == 1); elementwise tail stays f32.
    residual = h
    h2 = jnp.dot(h.astype(bf16), w2_ref[...],
                 preferred_element_type=jnp.float32) + b2_ref[...]
    h2 = jnp.where(h2 >= 0, h2, 0.01 * h2)
    # dropout -> identity (eval)
    h = h2 + residual

    # output_layer: narrow f32 store (masked vst; HBM bytes >> store-slot cost here).
    out_ref[...] = (jnp.dot(h.astype(bf16), w3_ref[...],
                            preferred_element_type=jnp.float32) + b3_ref[...])


def prepare_params(params, dp):
    """One-time weight prep (call OUTSIDE the per-step hot path): bf16 casts + w1 split."""
    w1, b1, w2, b2, w3, b3 = params               # f32, (in, out) layout
    bf16 = jnp.bfloat16
    return (w1[:dp].astype(bf16),                 # w1 rows feeding `past`
            w1[dp:].astype(bf16),                 # w1 rows feeding `future`
            b1.astype(jnp.float32),
            w2.astype(bf16), b2.astype(jnp.float32),
            w3.astype(bf16), b3.astype(jnp.float32))


def _pick_tile_b(B):
    """Largest reasonable tile; >=2 grid steps when B is big enough (v7x has 2 TCs)."""
    if B <= 16:
        return _round_up(B, 8)
    if B <= 2 * MAX_TILE_B:
        return _round_up((B + 1) // 2, 8)         # split batch into two fat tiles
    return MAX_TILE_B


@functools.partial(jax.jit, static_argnames=("p", "output_dim", "tile_b"))
def policy_nn_forward(past, future, prepared, *, p, output_dim, tile_b=None):
    """Free reshapes only in the wrapper; the whole MLP runs in one gridded Pallas call."""
    B = past.shape[0]
    past2d = past.reshape(B, -1)                  # view-like, stays f32
    fut2d = future.reshape(B, -1)
    dp, df = past2d.shape[1], fut2d.shape[1]

    w1p, w1f, b1, w2, b2, w3, b3 = prepared
    h_dim = w1p.shape[1]
    dout = w3.shape[1]                            # p * output_dim

    tb = tile_b if tile_b is not None else _pick_tile_b(B)
    b_pad = _round_up(B, tb)
    if b_pad != B:                                # only tiny / ragged batches pay a pad
        past2d = jnp.pad(past2d, ((0, b_pad - B), (0, 0)))
        fut2d = jnp.pad(fut2d, ((0, b_pad - B), (0, 0)))

    grid = (b_pad // tb,)
    row_spec = lambda cols: pl.BlockSpec((tb, cols), lambda i: (i, 0))
    pinned = lambda r, c: pl.BlockSpec((r, c), lambda i: (0, 0))

    cost = pl.CostEstimate(
        flops=2 * b_pad * h_dim * (dp + df + h_dim + dout),
        transcendentals=0,
        bytes_accessed=(b_pad * (dp + df) * 4            # f32 activations in
                        + b_pad * dout * 4               # narrow f32 out
                        + ((dp + df) * h_dim + h_dim * h_dim + h_dim * dout) * 2
                        + (2 * h_dim + dout) * 4),       # biases
    )

    out = pl.pallas_call(
        policy_mlp_kernel,
        out_shape=jax.ShapeDtypeStruct((b_pad, dout), jnp.float32),
        grid=grid,
        in_specs=[
            row_spec(dp),               # past tile (f32)
            row_spec(df),               # future tile (f32)
            pinned(dp, h_dim),          # w1 rows feeding `past` (bf16)
            pinned(df, h_dim),          # w1 rows feeding `future` (bf16)
            pinned(1, h_dim),           # b1
            pinned(h_dim, h_dim),       # w2 (bf16)
            pinned(1, h_dim),           # b2
            pinned(h_dim, dout),        # w3 (bf16, narrow)
            pinned(1, dout),            # b3 (narrow)
        ],
        out_specs=row_spec(dout),
        compiler_params=pltpu.CompilerParams(
            dimension_semantics=("parallel",)),  # batch tiles shard across TCs on v7x
        cost_estimate=cost,
    )(past2d, fut2d, w1p, w1f, b1, w2, b2, w3, b3)

    if b_pad != B:
        out = out[:B]                   # no-op in the common (unpadded) case
    return out.reshape(B, p, output_dim)


def init_params(key, input_dim_total, hidden_dim, out_total):
    """Deterministic synthetic parameters. Weights stored as (in, out), f32."""
    k1, k2, k3, k4, k5, k6 = jax.random.split(key, 6)
    s_in = 1.0 / jnp.sqrt(jnp.float32(input_dim_total))
    s_h = 1.0 / jnp.sqrt(jnp.float32(hidden_dim))
    w1 = jax.random.normal(k1, (input_dim_total, hidden_dim), jnp.float32) * s_in
    b1 = jax.random.normal(k2, (1, hidden_dim), jnp.float32) * 0.01
    w2 = jax.random.normal(k3, (hidden_dim, hidden_dim), jnp.float32) * s_h
    b2 = jax.random.normal(k4, (1, hidden_dim), jnp.float32) * 0.01
    w3 = jax.random.normal(k5, (hidden_dim, out_total), jnp.float32) * s_h
    b3 = jax.random.normal(k6, (1, out_total), jnp.float32) * 0.01
    return (w1, b1, w2, b2, w3, b3)


def reference_forward(past, future, params, *, p, output_dim):
    """Pure-JAX reference with the same bf16-operand / f32-accumulate numerics."""
    B = past.shape[0]
    x_p = past.reshape(B, -1).astype(jnp.bfloat16)
    x_f = future.reshape(B, -1).astype(jnp.bfloat16)
    w1, b1, w2, b2, w3, b3 = params
    dp = x_p.shape[1]
    h = (jnp.dot(x_p, w1[:dp].astype(jnp.bfloat16), preferred_element_type=jnp.float32)
         + jnp.dot(x_f, w1[dp:].astype(jnp.bfloat16), preferred_element_type=jnp.float32)
         + b1)
    h = jnp.where(h >= 0, h, 0.01 * h)
    r = h
    h2 = jnp.dot(h.astype(jnp.bfloat16), w2.astype(jnp.bfloat16),
                 preferred_element_type=jnp.float32) + b2
    h2 = jnp.where(h2 >= 0, h2, 0.01 * h2)
    h = h2 + r
    out = jnp.dot(h.astype(jnp.bfloat16), w3.astype(jnp.bfloat16),
                  preferred_element_type=jnp.float32) + b3
    return out.reshape(B, p, output_dim)


if __name__ == "__main__":
    # Small config consistent with the module's constructor (n_layers=3 -> 1 hidden block).
    B = 2
    past_input_dim = 6
    future_input_dim = 6
    window = 8
    p = 8
    output_dim = 1
    hidden_dim = 128

    input_dim_total = past_input_dim * window + future_input_dim * p  # 96
    out_total = output_dim * p                                        # 8
    dp = past_input_dim * window                                      # 48

    key = jax.random.PRNGKey(0)
    k_past, k_future, k_params = jax.random.split(key, 3)
    past = jax.random.normal(k_past, (B, window, past_input_dim), jnp.float32)
    future = jax.random.normal(k_future, (B, p, future_input_dim), jnp.float32)
    params = init_params(k_params, input_dim_total, hidden_dim, out_total)

    # One-time weight preparation, hoisted out of the per-call hot path.
    prepared = prepare_params(params, dp)

    # Tiny-batch path (single 8-row tile, padded batch rows sliced off).
    y = jax.block_until_ready(
        policy_nn_forward(past, future, prepared, p=p, output_dim=output_dim))
    y_ref = reference_forward(past, future, params, p=p, output_dim=output_dim)
    assert y.shape == (B, p, output_dim), y.shape
    assert jnp.allclose(y, y_ref, atol=1e-2, rtol=1e-2), "mismatch vs JAX reference (B=2)"

    # Gridded path: two 2048-row batch tiles, no padding, one tile per TensorCore on v7x.
    B2 = 4096
    kp2, kf2 = jax.random.split(jax.random.PRNGKey(1), 2)
    past2 = jax.random.normal(kp2, (B2, window, past_input_dim), jnp.float32)
    future2 = jax.random.normal(kf2, (B2, p, future_input_dim), jnp.float32)
    y2 = jax.block_until_ready(
        policy_nn_forward(past2, future2, prepared, p=p, output_dim=output_dim))
    y2_ref = reference_forward(past2, future2, params, p=p, output_dim=output_dim)
    assert y2.shape == (B2, p, output_dim), y2.shape
    assert jnp.allclose(y2, y2_ref, atol=1e-2, rtol=1e-2), "mismatch vs JAX reference (B=4096)"

    print("KERNEL_OK")
</pallas_src>

<mosaic_0001>
module attributes {stable_mosaic.version = 11 : i64} {
  func.func @policy_mlp_kernel(%arg0: i32, %arg1: memref<8x48xf32, #tpu.memory_space<vmem>>, %arg2: memref<8x48xf32, #tpu.memory_space<vmem>>, %arg3: memref<48x128xbf16, #tpu.memory_space<vmem>>, %arg4: memref<48x128xbf16, #tpu.memory_space<vmem>>, %arg5: memref<1x128xf32, #tpu.memory_space<vmem>>, %arg6: memref<128x128xbf16, #tpu.memory_space<vmem>>, %arg7: memref<1x128xf32, #tpu.memory_space<vmem>>, %arg8: memref<128x8xbf16, #tpu.memory_space<vmem>>, %arg9: memref<1x8xf32, #tpu.memory_space<vmem>>, %arg10: memref<8x8xf32, #tpu.memory_space<vmem>>) attributes {dimension_semantics = [#tpu.dimension_semantics<parallel>], iteration_bounds = array<i64: 1>, scalar_prefetch = 0 : i64, scratch_operands = 0 : i64, tpu.core_type = #tpu.core_type<tc>, window_params = [{transform_indices = @transform_0, window_bounds = array<i64: 8, 48>}, {transform_indices = @transform_1, window_bounds = array<i64: 8, 48>}, {pipeline_mode = #tpu.pipeline_mode<synchronous>, transform_indices = @transform_2, window_bounds = array<i64: 48, 128>}, {pipeline_mode = #tpu.pipeline_mode<synchronous>, transform_indices = @transform_3, window_bounds = array<i64: 48, 128>}, {pipeline_mode = #tpu.pipeline_mode<synchronous>, transform_indices = @transform_4, window_bounds = array<i64: 1, 128>}, {pipeline_mode = #tpu.pipeline_mode<synchronous>, transform_indices = @transform_5, window_bounds = array<i64: 128, 128>}, {pipeline_mode = #tpu.pipeline_mode<synchronous>, transform_indices = @transform_6, window_bounds = array<i64: 1, 128>}, {pipeline_mode = #tpu.pipeline_mode<synchronous>, transform_indices = @transform_7, window_bounds = array<i64: 128, 8>}, {pipeline_mode = #tpu.pipeline_mode<synchronous>, transform_indices = @transform_8, window_bounds = array<i64: 1, 8>}, {transform_indices = @transform_9, window_bounds = array<i64: 8, 8>}]} {
    %c0 = arith.constant 0 : index
    %c0_0 = arith.constant 0 : index
    %0 = vector.load %arg1[%c0, %c0_0] : memref<8x48xf32, #tpu.memory_space<vmem>>, vector<8x48xf32>
    %1 = arith.truncf %0 : vector<8x48xf32> to vector<8x48xbf16>
    %c0_1 = arith.constant 0 : index
    %c0_2 = arith.constant 0 : index
    %2 = vector.load %arg3[%c0_1, %c0_2] : memref<48x128xbf16, #tpu.memory_space<vmem>>, vector<48x128xbf16>
    %cst = arith.constant dense<0.000000e+00> : vector<8x128xf32>
    %3 = tpu.matmul %1, %2, %cst {dimension_numbers = #tpu.dot_dimension_numbers<[1], [0], [0], [1], [0, 0, 1, 1], [], []>} : vector<8x48xbf16>, vector<48x128xbf16>, vector<8x128xf32> -> vector<8x128xf32>
    %c0_3 = arith.constant 0 : index
    %c0_4 = arith.constant 0 : index
    %4 = vector.load %arg2[%c0_3, %c0_4] : memref<8x48xf32, #tpu.memory_space<vmem>>, vector<8x48xf32>
    %5 = arith.truncf %4 : vector<8x48xf32> to vector<8x48xbf16>
    %c0_5 = arith.constant 0 : index
    %c0_6 = arith.constant 0 : index
    %6 = vector.load %arg4[%c0_5, %c0_6] : memref<48x128xbf16, #tpu.memory_space<vmem>>, vector<48x128xbf16>
    %cst_7 = arith.constant dense<0.000000e+00> : vector<8x128xf32>
    %7 = tpu.matmul %5, %6, %cst_7 {dimension_numbers = #tpu.dot_dimension_numbers<[1], [0], [0], [1], [0, 0, 1, 1], [], []>} : vector<8x48xbf16>, vector<48x128xbf16>, vector<8x128xf32> -> vector<8x128xf32>
    %8 = arith.addf %3, %7 : vector<8x128xf32>
    %c0_8 = arith.constant 0 : index
    %c0_9 = arith.constant 0 : index
    %9 = vector.load %arg5[%c0_8, %c0_9] : memref<1x128xf32, #tpu.memory_space<vmem>>, vector<1x128xf32>
    %10 = vector.broadcast %9 : vector<1x128xf32> to vector<8x128xf32>
    %11 = arith.addf %8, %10 : vector<8x128xf32>
    %cst_10 = arith.constant 0.000000e+00 : f32
    %12 = vector.broadcast %cst_10 : f32 to vector<8x128xf32>
    %13 = arith.cmpf oge, %11, %12 : vector<8x128xf32>
    %cst_11 = arith.constant 0.00999999977 : f32
    %14 = vector.broadcast %cst_11 : f32 to vector<8x128xf32>
    %15 = arith.mulf %14, %11 : vector<8x128xf32>
    %16 = arith.select %13, %11, %15 : vector<8x128xi1>, vector<8x128xf32>
    %17 = arith.truncf %16 : vector<8x128xf32> to vector<8x128xbf16>
    %c0_12 = arith.constant 0 : index
    %c0_13 = arith.constant 0 : index
    %18 = vector.load %arg6[%c0_12, %c0_13] : memref<128x128xbf16, #tpu.memory_space<vmem>>, vector<128x128xbf16>
    %cst_14 = arith.constant dense<0.000000e+00> : vector<8x128xf32>
    %19 = tpu.matmul %17, %18, %cst_14 {dimension_numbers = #tpu.dot_dimension_numbers<[1], [0], [0], [1], [0, 0, 1, 1], [], []>} : vector<8x128xbf16>, vector<128x128xbf16>, vector<8x128xf32> -> vector<8x128xf32>
    %c0_15 = arith.constant 0 : index
    %c0_16 = arith.constant 0 : index
    %20 = vector.load %arg7[%c0_15, %c0_16] : memref<1x128xf32, #tpu.memory_space<vmem>>, vector<1x128xf32>
    %21 = vector.broadcast %20 : vector<1x128xf32> to vector<8x128xf32>
    %22 = arith.addf %19, %21 : vector<8x128xf32>
    %cst_17 = arith.constant 0.000000e+00 : f32
    %23 = vector.broadcast %cst_17 : f32 to vector<8x128xf32>
    %24 = arith.cmpf oge, %22, %23 : vector<8x128xf32>
    %cst_18 = arith.constant 0.00999999977 : f32
    %25 = vector.broadcast %cst_18 : f32 to vector<8x128xf32>
    %26 = arith.mulf %25, %22 : vector<8x128xf32>
    %27 = arith.select %24, %22, %26 : vector<8x128xi1>, vector<8x128xf32>
    %28 = arith.addf %27, %16 : vector<8x128xf32>
    %29 = arith.truncf %28 : vector<8x128xf32> to vector<8x128xbf16>
    %c0_19 = arith.constant 0 : index
    %c0_20 = arith.constant 0 : index
    %30 = vector.load %arg8[%c0_19, %c0_20] : memref<128x8xbf16, #tpu.memory_space<vmem>>, vector<128x8xbf16>
    %cst_21 = arith.constant dense<0.000000e+00> : vector<8x8xf32>
    %31 = tpu.matmul %29, %30, %cst_21 {dimension_numbers = #tpu.dot_dimension_numbers<[1], [0], [0], [1], [0, 0, 1, 1], [], []>} : vector<8x128xbf16>, vector<128x8xbf16>, vector<8x8xf32> -> vector<8x8xf32>
    %c0_22 = arith.constant 0 : index
    %c0_23 = arith.constant 0 : index
    %32 = vector.load %arg9[%c0_22, %c0_23] : memref<1x8xf32, #tpu.memory_space<vmem>>, vector<1x8xf32>
    %33 = vector.broadcast %32 : vector<1x8xf32> to vector<8x8xf32>
    %34 = arith.addf %31, %33 : vector<8x8xf32>
    %c0_24 = arith.constant 0 : index
    %c0_25 = arith.constant 0 : index
    %35 = vector.load %arg10[%c0_24, %c0_25] : memref<8x8xf32, #tpu.memory_space<vmem>>, vector<8x8xf32>
    tpu.vector_store %arg10[%c0_24, %c0_25], %34 {strides = array<i32>} : memref<8x8xf32, #tpu.memory_space<vmem>>, vector<8x8xf32>,
    return
  }
  func.func @transform_0(%arg0: i32) -> (i32, i32) {
    %c0_i32 = arith.constant 0 : i32
    %c0_i32_0 = arith.constant 0 : i32
    return %arg0, %c0_i32 : i32, i32
  }
  func.func @transform_1(%arg0: i32) -> (i32, i32) {
    %c0_i32 = arith.constant 0 : i32
    %c0_i32_0 = arith.constant 0 : i32
    return %arg0, %c0_i32 : i32, i32
  }
  func.func @transform_2(%arg0: i32) -> (i32, i32) {
    %c0_i32 = arith.constant 0 : i32
    %c0_i32_0 = arith.constant 0 : i32
    %c0_i32_1 = arith.constant 0 : i32
    return %c0_i32, %c0_i32_0 : i32, i32
  }
  func.func @transform_3(%arg0: i32) -> (i32, i32) {
    %c0_i32 = arith.constant 0 : i32
    %c0_i32_0 = arith.constant 0 : i32
    %c0_i32_1 = arith.constant 0 : i32
    return %c0_i32, %c0_i32_0 : i32, i32
  }
  func.func @transform_4(%arg0: i32) -> (i32, i32) {
    %c0_i32 = arith.constant 0 : i32
    %c0_i32_0 = arith.constant 0 : i32
    %c0_i32_1 = arith.constant 0 : i32
    return %c0_i32, %c0_i32_0 : i32, i32
  }
  func.func @transform_5(%arg0: i32) -> (i32, i32) {
    %c0_i32 = arith.constant 0 : i32
    %c0_i32_0 = arith.constant 0 : i32
    %c0_i32_1 = arith.constant 0 : i32
    return %c0_i32, %c0_i32_0 : i32, i32
  }
  func.func @transform_6(%arg0: i32) -> (i32, i32) {
    %c0_i32 = arith.constant 0 : i32
    %c0_i32_0 = arith.constant 0 : i32
    %c0_i32_1 = arith.constant 0 : i32
    return %c0_i32, %c0_i32_0 : i32, i32
  }
  func.func @transform_7(%arg0: i32) -> (i32, i32) {
    %c0_i32 = arith.constant 0 : i32
    %c0_i32_0 = arith.constant 0 : i32
    %c0_i32_1 = arith.constant 0 : i32
    return %c0_i32, %c0_i32_0 : i32, i32
  }
  func.func @transform_8(%arg0: i32) -> (i32, i32) {
    %c0_i32 = arith.constant 0 : i32
    %c0_i32_0 = arith.constant 0 : i32
    %c0_i32_1 = arith.constant 0 : i32
    return %c0_i32, %c0_i32_0 : i32, i32
  }
  func.func @transform_9(%arg0: i32) -> (i32, i32) {
    %c0_i32 = arith.constant 0 : i32
    %c0_i32_0 = arith.constant 0 : i32
    return %arg0, %c0_i32 : i32, i32
  }
}

</mosaic_0001>

<llo_original>
// kernel: policy_nn_forward.1
$region0: #{policy_nn_forward.1}
  #allocation0 [shape = 'u32[]', space=smem, size = 0x4, offset = 0x4, fixed_abs, tag = 'smem constant byte address 0x4 - core index']
  #allocation1 [shape = 'u32[144,128]{1,0:T(1,128)}', space=vmem, size = 0x12000, scoped, tag = 'internal scratch']
  %s0 = inlined_call_operand.vmem [shape: f32[8,48], index: 0, kind: input, shape index: {}]
  %s1 = inlined_call_operand.vmem [shape: f32[8,48], index: 1, kind: input, shape index: {}]
  %s2 = inlined_call_operand.vmem [shape: bf16[48,128], index: 2, kind: input, shape index: {}]
  %s3 = inlined_call_operand.vmem [shape: bf16[48,128], index: 3, kind: input, shape index: {}]
  %s4 = inlined_call_operand.vmem [shape: f32[1,128], index: 4, kind: input, shape index: {}]
  %s5 = inlined_call_operand.vmem [shape: bf16[128,128], index: 5, kind: input, shape index: {}]
  %s6 = inlined_call_operand.vmem [shape: f32[1,128], index: 6, kind: input, shape index: {}]
  %s7 = inlined_call_operand.vmem [shape: bf16[128,8], index: 7, kind: input, shape index: {}]
  %s8 = inlined_call_operand.vmem [shape: f32[1,8], index: 8, kind: input, shape index: {}]
  %s9 = inlined_call_operand.vmem [shape: f32[8,8], index: 9, kind: output, shape index: {}]
  %s10 = sld [smem:[#allocation0]]
  $region46: #{policy_nn_forward.1} parent=0
    _
  %s12 = ssub.s32 1, %s10
  %s13 = scalar_select 0, %s12, %s10
  // Predicated region
  $region2: #{policy_nn_forward.1} parent=0 // pred_check
    _
  $region3: #{policy_nn_forward.1} parent=0 // pred_check_branch
    %15 = sbr.rel (0) target = $region5
  $region4: #{policy_nn_forward.1} parent=0 // pred_region
    _
  $region5: #{policy_nn_forward.1} parent=0 // pred_fallthru
    _
  // Predicated region
  $region6: #{policy_nn_forward.1} parent=0 // pred_check
    _
  $region7: #{policy_nn_forward.1} parent=0 // pred_check_branch
    %17 = sbr.rel (0) target = $region9
  $region8: #{policy_nn_forward.1} parent=0 // pred_region
    _
  $region9: #{policy_nn_forward.1} parent=0 // pred_fallthru
    _
  // Predicated region
  $region10: #{policy_nn_forward.1} parent=0 // pred_check
    _
  $region11: #{policy_nn_forward.1} parent=0 // pred_check_branch
    %19 = sbr.rel (0) target = $region13
  $region12: #{policy_nn_forward.1} parent=0 // pred_region
    _
  $region13: #{policy_nn_forward.1} parent=0 // pred_fallthru
    _
  // Predicated region
  $region14: #{policy_nn_forward.1} parent=0 // pred_check
    _
  $region15: #{policy_nn_forward.1} parent=0 // pred_check_branch
    %21 = sbr.rel (0) target = $region17
  $region16: #{policy_nn_forward.1} parent=0 // pred_region
    _
  $region17: #{policy_nn_forward.1} parent=0 // pred_fallthru
    _
  // Predicated region
  $region18: #{policy_nn_forward.1} parent=0 // pred_check
    _
  $region19: #{policy_nn_forward.1} parent=0 // pred_check_branch
    %23 = sbr.rel (0) target = $region21
  $region20: #{policy_nn_forward.1} parent=0 // pred_region
    _
  $region21: #{policy_nn_forward.1} parent=0 // pred_fallthru
    _
  // Predicated region
  $region22: #{policy_nn_forward.1} parent=0 // pred_check
    _
  $region23: #{policy_nn_forward.1} parent=0 // pred_check_branch
    %25 = sbr.rel (0) target = $region25
  $region24: #{policy_nn_forward.1} parent=0 // pred_region
    _
  $region25: #{policy_nn_forward.1} parent=0 // pred_fallthru
    _
  // Predicated region
  $region26: #{policy_nn_forward.1} parent=0 // pred_check
    _
  $region27: #{policy_nn_forward.1} parent=0 // pred_check_branch
    %27 = sbr.rel (0) target = $region29
  $region28: #{policy_nn_forward.1} parent=0 // pred_region
    _
  $region29: #{policy_nn_forward.1} parent=0 // pred_fallthru
    _
  // Predicated region
  $region30: #{policy_nn_forward.1} parent=0 // pred_check
    _
  $region31: #{policy_nn_forward.1} parent=0 // pred_check_branch
    %29 = sbr.rel (0) target = $region33
  $region32: #{policy_nn_forward.1} parent=0 // pred_region
    _
  $region33: #{policy_nn_forward.1} parent=0 // pred_fallthru
    _
  // Predicated region
  $region34: #{policy_nn_forward.1} parent=0 // pred_check
    _
  $region35: #{policy_nn_forward.1} parent=0 // pred_check_branch
    %31 = sbr.rel (0) target = $region37
  $region36: #{policy_nn_forward.1} parent=0 // pred_region
    _
  $region37: #{policy_nn_forward.1} parent=0 // pred_fallthru
    _
  %v33 = vld [vmem:[%s0] sm:$0xff]
  %v34 = vpack.c.bf16 %v33, %v33
  %v35 = vld [vmem:[%s2] sm:$0xf]
  %v36 = vld [vmem:[%s2 + $0x4] sm:$0xf]
  %v37 = vld [vmem:[%s2 + $0x8] sm:$0xf]
  %v38 = vld [vmem:[%s2 + $0xc] sm:$0xf]
  %v39 = vld [vmem:[%s2 + $0x10] sm:$0xf]
  %v40 = vld [vmem:[%s2 + $0x14] sm:$0xf]
  %v41 = vld [vmem:[%s1] sm:$0xff]
  %v42 = vpack.c.bf16 %v41, %v41
  %v43 = vld [vmem:[%s3] sm:$0xf]
  %v44 = vld [vmem:[%s3 + $0x4] sm:$0xf]
  %v45 = vld [vmem:[%s3 + $0x8] sm:$0xf]
  %v46 = vld [vmem:[%s3 + $0xc] sm:$0xf]
  %v47 = vld [vmem:[%s3 + $0x10] sm:$0xf]
  %v48 = vld [vmem:[%s3 + $0x14] sm:$0xf]
  %v55 = vunpack.c.l.b16 %v43
  %v56 = vunpack.c.l.b16 %v44
  %v57 = vunpack.c.l.b16 %v45
  %v58 = vunpack.c.l.b16 %v46
  %v59 = vunpack.c.l.b16 %v47
  %v60 = vunpack.c.l.b16 %v48
  %v61 = vpack.c.b16 %v56, %v55
  %v62 = vpack.c.b16 %v58, %v57
  %v63 = vpack.c.b16 %v60, %v59
  %vm67 = vcmask 392192
  %v69 = vsel %vm67, %v42, 0
  %71 = vmatprep.subr.bf16.mxu0 0
  %72 = vmatpush1.bf16.msra.mxu0 %v61
  %73 = vmatprep.subr.bf16.mxu0 0
  %74 = vmatpush1.bf16.msra.mxu0 %v62
  %75 = vmatprep.subr.bf16.mxu0 0
  %76 = vmatpush1.bf16.msra.mxu0 %v63
  %77 = vmatprep.subr.bf16.mxu0 0
  %78 = vmatpush1.bf16.msra.mxu0 0
  %79 = vmatprep.subr.bf16.mxu0 0
  %80 = vmatpush1.bf16.msra.mxu0 0
  %81 = vmatprep.subr.bf16.mxu0 0
  %82 = vmatpush1.bf16.msra.mxu0 0
  %83 = vmatprep.subr.bf16.mxu0 0
  %84 = vmatpush1.bf16.msra.mxu0 0
  %85 = vmatprep.subr.bf16.mxu0 0
  %86 = vmatpush1.bf16.msra.mxu0 0
  %87 = vmatprep.subr.bf16.mxu0 0
  %88 = vmatpush1.bf16.msra.mxu0 0
  %89 = vmatprep.subr.bf16.mxu0 0
  %90 = vmatpush1.bf16.msra.mxu0 0
  %91 = vmatprep.subr.bf16.mxu0 0
  %92 = vmatpush1.bf16.msra.mxu0 0
  %93 = vmatprep.subr.bf16.mxu0 0
  %94 = vmatpush1.bf16.msra.mxu0 0
  %95 = vmatprep.subr.bf16.mxu0 0
  %96 = vmatpush1.bf16.msra.mxu0 0
  %97 = vmatprep.subr.bf16.mxu0 0
  %98 = vmatpush1.bf16.msra.mxu0 0
  %99 = vmatprep.subr.bf16.mxu0 0
  %100 = vmatpush1.bf16.msra.mxu0 0
  %101 = vmatprep.subr.bf16.mxu0 0
  %102 = vmatpush1.bf16.msra.mxu0 0
  %103 = vmatprep.mubr.bf16.mxu0 0
  %104 = vmatmul.mubr.bf16.gmra.mrb[0].mxu0 %v69
  %v105 = vpop.f32.mrb[0].mxu0
  %v106 = vadd.f32 0.0, %v105
  %v107 = vpop.f32.mrb[0].mxu0
  %v108 = vpop.f32.mrb[0].mxu0
  %v109 = vpop.f32.mrb[0].mxu0
  %110 = vdwg.mxu0
  %v117 = vunpack.c.l.b16 %v35
  %v118 = vunpack.c.l.b16 %v36
  %v119 = vunpack.c.l.b16 %v37
  %v120 = vunpack.c.l.b16 %v38
  %v121 = vunpack.c.l.b16 %v39
  %v122 = vunpack.c.l.b16 %v40
  %v123 = vpack.c.b16 %v118, %v117
  %v124 = vpack.c.b16 %v120, %v119
  %v125 = vpack.c.b16 %v122, %v121
  %v130 = vsel %vm67, %v34, 0
  %132 = vmatprep.subr.bf16.mxu0 0
  %133 = vmatpush1.bf16.msra.mxu0 %v123
  %134 = vmatprep.subr.bf16.mxu0 0
  %135 = vmatpush1.bf16.msra.mxu0 %v124
  %136 = vmatprep.subr.bf16.mxu0 0
  %137 = vmatpush1.bf16.msra.mxu0 %v125
  %138 = vmatprep.subr.bf16.mxu0 0
  %139 = vmatpush1.bf16.msra.mxu0 0
  %140 = vmatprep.subr.bf16.mxu0 0
  %141 = vmatpush1.bf16.msra.mxu0 0
  %142 = vmatprep.subr.bf16.mxu0 0
  %143 = vmatpush1.bf16.msra.mxu0 0
  %144 = vmatprep.subr.bf16.mxu0 0
  %145 = vmatpush1.bf16.msra.mxu0 0
  %146 = vmatprep.subr.bf16.mxu0 0
  %147 = vmatpush1.bf16.msra.mxu0 0
  %148 = vmatprep.subr.bf16.mxu0 0
  %149 = vmatpush1.bf16.msra.mxu0 0
  %150 = vmatprep.subr.bf16.mxu0 0
  %151 = vmatpush1.bf16.msra.mxu0 0
  %152 = vmatprep.subr.bf16.mxu0 0
  %153 = vmatpush1.bf16.msra.mxu0 0
  %154 = vmatprep.subr.bf16.mxu0 0
  %155 = vmatpush1.bf16.msra.mxu0 0
  %156 = vmatprep.subr.bf16.mxu0 0
  %157 = vmatpush1.bf16.msra.mxu0 0
  %158 = vmatprep.subr.bf16.mxu0 0
  %159 = vmatpush1.bf16.msra.mxu0 0
  %160 = vmatprep.subr.bf16.mxu0 0
  %161 = vmatpush1.bf16.msra.mxu0 0
  %162 = vmatprep.subr.bf16.mxu0 0
  %163 = vmatpush1.bf16.msra.mxu0 0
  %164 = vmatprep.mubr.bf16.mxu0 0
  %165 = vmatmul.mubr.bf16.gmra.mrb[0].mxu0 %v130
  %v166 = vpop.f32.mrb[0].mxu0
  %v167 = vadd.f32 %v106, %v166
  %v168 = vpop.f32.mrb[0].mxu0
  %v169 = vpop.f32.mrb[0].mxu0
  %v170 = vpop.f32.mrb[0].mxu0
  %171 = vdwg.mxu0
  %v172 = vld [vmem:[%s4] sm:$0x1]
  %v174 = vlaneseq
  %v175 = vshrl.u32 %v174, 7
  %v176 = vsub.s32 0, %v175
  %v177 = vrot.slane %v172, %v176
  %v179 = vadd.f32 %v167, %v177
  %vm180 = vcmp.ge.f32.partialorder %v179, 0.0
  %v181 = vmul.f32 %v179, 0.01
  %v182 = vsel %vm180, %v179, %v181
  %v183 = vpack.c.bf16 %v182, %v182
  %v184 = vld [vmem:[%s5] sm:$0xf]
  %v185 = vld [vmem:[%s5 + $0x4] sm:$0xf]
  %v186 = vld [vmem:[%s5 + $0x8] sm:$0xf]
  %v187 = vld [vmem:[%s5 + $0xc] sm:$0xf]
  %v188 = vld [vmem:[%s5 + $0x10] sm:$0xf]
  %v189 = vld [vmem:[%s5 + $0x14] sm:$0xf]
  %v190 = vld [vmem:[%s5 + $0x18] sm:$0xf]
  %v191 = vld [vmem:[%s5 + $0x1c] sm:$0xf]
  %v192 = vld [vmem:[%s5 + $0x20] sm:$0xf]
  %v193 = vld [vmem:[%s5 + $0x24] sm:$0xf]
  %v194 = vld [vmem:[%s5 + $0x28] sm:$0xf]
  %v195 = vld [vmem:[%s5 + $0x2c] sm:$0xf]
  %v196 = vld [vmem:[%s5 + $0x30] sm:$0xf]
  %v197 = vld [vmem:[%s5 + $0x34] sm:$0xf]
  %v198 = vld [vmem:[%s5 + $0x38] sm:$0xf]
  %v199 = vld [vmem:[%s5 + $0x3c] sm:$0xf]
  %v200 = vld [vmem:[%s6] sm:$0x1]
  %v202 = vlaneseq
  %v203 = vshrl.u32 %v202, 7
  %v204 = vsub.s32 0, %v203
  %v205 = vrot.slane %v200, %v204
  %v223 = vunpack.c.l.b16 %v184
  %v224 = vunpack.c.l.b16 %v185
  %v225 = vunpack.c.l.b16 %v186
  %v226 = vunpack.c.l.b16 %v187
  %v227 = vunpack.c.l.b16 %v188
  %v228 = vunpack.c.l.b16 %v189
  %v229 = vunpack.c.l.b16 %v190
  %v230 = vunpack.c.l.b16 %v191
  %v231 = vunpack.c.l.b16 %v192
  %v232 = vunpack.c.l.b16 %v193
  %v233 = vunpack.c.l.b16 %v194
  %v234 = vunpack.c.l.b16 %v195
  %v235 = vunpack.c.l.b16 %v196
  %v236 = vunpack.c.l.b16 %v197
  %v237 = vunpack.c.l.b16 %v198
  %v238 = vunpack.c.l.b16 %v199
  %v239 = vpack.c.b16 %v224, %v223
  %v240 = vpack.c.b16 %v226, %v225
  %v241 = vpack.c.b16 %v228, %v227
  %v242 = vpack.c.b16 %v230, %v229
  %v243 = vpack.c.b16 %v232, %v231
  %v244 = vpack.c.b16 %v234, %v233
  %v245 = vpack.c.b16 %v236, %v235
  %v246 = vpack.c.b16 %v238, %v237
  %255 = vmatprep.subr.bf16.mxu0 0
  %256 = vmatpush1.bf16.msra.mxu0 %v239
  %257 = vmatprep.subr.bf16.mxu0 0
  %258 = vmatpush1.bf16.msra.mxu0 %v240
  %259 = vmatprep.subr.bf16.mxu0 0
  %260 = vmatpush1.bf16.msra.mxu0 %v241
  %261 = vmatprep.subr.bf16.mxu0 0
  %262 = vmatpush1.bf16.msra.mxu0 %v242
  %263 = vmatprep.subr.bf16.mxu0 0
  %264 = vmatpush1.bf16.msra.mxu0 %v243
  %265 = vmatprep.subr.bf16.mxu0 0
  %266 = vmatpush1.bf16.msra.mxu0 %v244
  %267 = vmatprep.subr.bf16.mxu0 0
  %268 = vmatpush1.bf16.msra.mxu0 %v245
  %269 = vmatprep.subr.bf16.mxu0 0
  %270 = vmatpush1.bf16.msra.mxu0 %v246
  %271 = vmatprep.subr.bf16.mxu0 0
  %272 = vmatpush1.bf16.msra.mxu0 0
  %273 = vmatprep.subr.bf16.mxu0 0
  %274 = vmatpush1.bf16.msra.mxu0 0
  %275 = vmatprep.subr.bf16.mxu0 0
  %276 = vmatpush1.bf16.msra.mxu0 0
  %277 = vmatprep.subr.bf16.mxu0 0
  %278 = vmatpush1.bf16.msra.mxu0 0
  %279 = vmatprep.subr.bf16.mxu0 0
  %280 = vmatpush1.bf16.msra.mxu0 0
  %281 = vmatprep.subr.bf16.mxu0 0
  %282 = vmatpush1.bf16.msra.mxu0 0
  %283 = vmatprep.subr.bf16.mxu0 0
  %284 = vmatpush1.bf16.msra.mxu0 0
  %285 = vmatprep.subr.bf16.mxu0 0
  %286 = vmatpush1.bf16.msra.mxu0 0
  %287 = vmatprep.mubr.bf16.mxu0 0
  %288 = vmatmul.mubr.bf16.gmra.mrb[0].mxu0 %v183
  %v289 = vpop.f32.mrb[0].mxu0
  %v290 = vadd.f32 %v205, %v289
  %v291 = vpop.f32.mrb[0].mxu0
  %v292 = vpop.f32.mrb[0].mxu0
  %v293 = vpop.f32.mrb[0].mxu0
  %294 = vdwg.mxu0
  %vm295 = vcmp.ge.f32.partialorder %v290, 0.0
  %v296 = vmul.f32 %v290, 0.01
  %v297 = vsel %vm295, %v290, %v296
  %v298 = vadd.f32 %v297, %v182
  %v299 = vpack.c.bf16 %v298, %v298
  %v300 = vld [vmem:[%s7] sm:$0xf]
  %v301 = vld [vmem:[%s7 + $0x4] sm:$0xf]
  %v302 = vld [vmem:[%s7 + $0x8] sm:$0xf]
  %v303 = vld [vmem:[%s7 + $0xc] sm:$0xf]
  %v304 = vld [vmem:[%s7 + $0x10] sm:$0xf]
  %v305 = vld [vmem:[%s7 + $0x14] sm:$0xf]
  %v306 = vld [vmem:[%s7 + $0x18] sm:$0xf]
  %v307 = vld [vmem:[%s7 + $0x1c] sm:$0xf]
  %v308 = vld [vmem:[%s7 + $0x20] sm:$0xf]
  %v309 = vld [vmem:[%s7 + $0x24] sm:$0xf]
  %v310 = vld [vmem:[%s7 + $0x28] sm:$0xf]
  %v311 = vld [vmem:[%s7 + $0x2c] sm:$0xf]
  %v312 = vld [vmem:[%s7 + $0x30] sm:$0xf]
  %v313 = vld [vmem:[%s7 + $0x34] sm:$0xf]
  %v314 = vld [vmem:[%s7 + $0x38] sm:$0xf]
  %v315 = vld [vmem:[%s7 + $0x3c] sm:$0xf]
  %v316 = vld [vmem:[%s8] sm:$0x1]
  %v318 = vlaneseq
  %v319 = vshrl.u32 %v318, 7
  %v320 = vsub.s32 0, %v319
  %v321 = vrot.slane %v316, %v320
  %v339 = vunpack.c.l.b16 %v300
  %v340 = vunpack.c.l.b16 %v301
  %v341 = vunpack.c.l.b16 %v302
  %v342 = vunpack.c.l.b16 %v303
  %v343 = vunpack.c.l.b16 %v304
  %v344 = vunpack.c.l.b16 %v305
  %v345 = vunpack.c.l.b16 %v306
  %v346 = vunpack.c.l.b16 %v307
  %v347 = vunpack.c.l.b16 %v308
  %v348 = vunpack.c.l.b16 %v309
  %v349 = vunpack.c.l.b16 %v310
  %v350 = vunpack.c.l.b16 %v311
  %v351 = vunpack.c.l.b16 %v312
  %v352 = vunpack.c.l.b16 %v313
  %v353 = vunpack.c.l.b16 %v314
  %v354 = vunpack.c.l.b16 %v315
  %v355 = vpack.c.b16 %v340, %v339
  %v356 = vpack.c.b16 %v342, %v341
  %v357 = vpack.c.b16 %v344, %v343
  %v358 = vpack.c.b16 %v346, %v345
  %v359 = vpack.c.b16 %v348, %v347
  %v360 = vpack.c.b16 %v350, %v349
  %v361 = vpack.c.b16 %v352, %v351
  %v362 = vpack.c.b16 %v354, %v353
  %371 = vmatprep.subr.bf16.mxu0 0
  %372 = vmatpush1.bf16.msra.mxu0 %v355
  %373 = vmatprep.subr.bf16.mxu0 0
  %374 = vmatpush1.bf16.msra.mxu0 %v356
  %375 = vmatprep.subr.bf16.mxu0 0
  %376 = vmatpush1.bf16.msra.mxu0 %v357
  %377 = vmatprep.subr.bf16.mxu0 0
  %378 = vmatpush1.bf16.msra.mxu0 %v358
  %379 = vmatprep.subr.bf16.mxu0 0
  %380 = vmatpush1.bf16.msra.mxu0 %v359
  %381 = vmatprep.subr.bf16.mxu0 0
  %382 = vmatpush1.bf16.msra.mxu0 %v360
  %383 = vmatprep.subr.bf16.mxu0 0
  %384 = vmatpush1.bf16.msra.mxu0 %v361
  %385 = vmatprep.subr.bf16.mxu0 0
  %386 = vmatpush1.bf16.msra.mxu0 %v362
  %387 = vmatprep.subr.bf16.mxu0 0
  %388 = vmatpush1.bf16.msra.mxu0 0
  %389 = vmatprep.subr.bf16.mxu0 0
  %390 = vmatpush1.bf16.msra.mxu0 0
  %391 = vmatprep.subr.bf16.mxu0 0
  %392 = vmatpush1.bf16.msra.mxu0 0
  %393 = vmatprep.subr.bf16.mxu0 0
  %394 = vmatpush1.bf16.msra.mxu0 0
  %395 = vmatprep.subr.bf16.mxu0 0
  %396 = vmatpush1.bf16.msra.mxu0 0
  %397 = vmatprep.subr.bf16.mxu0 0
  %398 = vmatpush1.bf16.msra.mxu0 0
  %399 = vmatprep.subr.bf16.mxu0 0
  %400 = vmatpush1.bf16.msra.mxu0 0
  %401 = vmatprep.subr.bf16.mxu0 0
  %402 = vmatpush1.bf16.msra.mxu0 0
  %403 = vmatprep.mubr.bf16.mxu0 0
  %404 = vmatmul.mubr.bf16.gmra.mrb[0].mxu0 %v299
  %v405 = vpop.f32.mrb[0].mxu0
  %v406 = vadd.f32 %v321, %v405
  %v407 = vpop.f32.mrb[0].mxu0
  %v408 = vpop.f32.mrb[0].mxu0
  %v409 = vpop.f32.mrb[0].mxu0
  %410 = vdwg.mxu0
  %vm411 = vcmask 64512
  %412 = vst.msk [vmem:[%s9] sm:$0xff] %vm411, %v406
  // Predicated region
  $region38: #{policy_nn_forward.1} parent=0 // pred_check
    _
  $region39: #{policy_nn_forward.1} parent=0 // pred_check_branch
    %414 = sbr.rel (0) target = $region41
  $region40: #{policy_nn_forward.1} parent=0 // pred_region
    _
  $region41: #{policy_nn_forward.1} parent=0 // pred_fallthru
    _
  // Predicated region
  $region42: #{policy_nn_forward.1} parent=0 // pred_check
    _
  $region43: #{policy_nn_forward.1} parent=0 // pred_check_branch
    %416 = sbr.rel (0) target = $region45
  $region44: #{policy_nn_forward.1} parent=0 // pred_region
    _
  $region45: #{policy_nn_forward.1} parent=0 // pred_fallthru
    _

</llo_original>
